<compile_context>
chip_gen: v7x
topology: tpu7x:2x2x1
jax: 0.10.0
libtpu: 0.0.40
codegen_flags: <defaults>
</compile_context>

<pallas_src>
import jax
import jax.numpy as jnp
from jax.experimental import pallas as pl
from jax.experimental.pallas import tpu as pltpu

_MiB = 1024 * 1024
_LANES = 128


# --------------------------------------------------------------------------
# Kernels
# --------------------------------------------------------------------------
def _split_last_x_kernel(xy_ref, x_ref):
    # x = xy[:, :-1]. (y is produced lane-dense in the wrapper, outside the
    # kernel, to avoid a (TM, 1) block padded to 128 lanes.)
    x_ref[...] = xy_ref[:, :-1]


def _split_shift_kernel(xy_ref, x_ref, y_ref):
    # x = xy[:, :-1]; y = xy[:, 1:]. Both outputs are lane-dense (width d-1).
    xy = xy_ref[...]
    x_ref[...] = xy[:, :-1]
    y_ref[...] = xy[:, 1:]


# --------------------------------------------------------------------------
# Generation-aware sizing
# --------------------------------------------------------------------------
def _tpu_generation():
    """Best-effort TPU generation tag ('v5' / 'v6' / 'v7') or None."""
    try:
        kind = jax.devices()[0].device_kind.lower()
    except Exception:
        return None
    for gen, tags in (("v7", ("v7", "tpu7")),
                      ("v6", ("v6", "tpu6")),
                      ("v5", ("v5", "tpu5"))):
        if any(t in kind for t in tags):
            return gen
    return None


# (tile-budget bytes, vmem_limit_bytes) per generation.
#   v5e: 16 MiB scoped default  -> budget 12 MiB
#   v6e: 32 MiB scoped default  -> budget 24 MiB
#   v7x: 32 MiB scoped (64 MiB physical) -> budget 24 MiB
_GEN_VMEM = {
    "v5": (12 * _MiB, 16 * _MiB),
    "v6": (24 * _MiB, 32 * _MiB),
    "v7": (24 * _MiB, 32 * _MiB),
}
_DEFAULT_VMEM = (12 * _MiB, 16 * _MiB)   # conservative fallback


def _round_up(x, m):
    return ((x + m - 1) // m) * m


def _sublane_align(itemsize):
    # Native sublane packing: f32 -> 8 rows, bf16/f16 -> 16, int8/fp8 -> 32.
    return {4: 8, 2: 16, 1: 32}.get(itemsize, 8)


def _pick_row_tile(n_rows, in_cols, out_cols, itemsize, budget_bytes):
    # Account for real VMEM occupancy: round every width up to 128 lanes and
    # double for the two pipeline buffers per array.
    padded_cols = [_round_up(c, _LANES) for c in (in_cols, *out_cols)]
    per_row = sum(padded_cols) * itemsize * 2
    tm = budget_bytes // max(per_row, 1)
    tm = min(tm, 4096)                       # lifted cap (was 1024)
    align = _sublane_align(itemsize)
    tm = (tm // align) * align
    tm = max(tm, align)
    if tm >= n_rows:
        return n_rows                        # single full-extent block is legal
    return tm


# --------------------------------------------------------------------------
# Wrapper
# --------------------------------------------------------------------------
def split_example(xy, mode="last", *, use_pallas=None,
                  min_lanes_for_pallas=256, min_bytes_for_pallas=1 * _MiB):
    """Pallas implementation of SplitExample.forward.

    use_pallas=None auto-dispatches: small tensors (narrow feature dim OR
    small total bytes) use XLA-fused jnp slices; large tensors stream through
    the tiled Pallas copy kernel.
    """
    if mode not in ("last", "shift"):
        raise ValueError(f"unknown mode: {mode}")

    lead = xy.shape[:-1]
    d = xy.shape[-1]
    itemsize = jnp.dtype(xy.dtype).itemsize

    n_rows = 1
    for s in lead:
        n_rows *= s
    total_bytes = n_rows * d * itemsize

    if use_pallas is None:
        use_pallas = (d >= min_lanes_for_pallas
                      and total_bytes >= min_bytes_for_pallas)
    if (not use_pallas) or d < 2 or n_rows == 0:
        # Fast path: XLA fuses these slices into the consumer.
        if mode == "last":
            return xy[..., :-1], xy[..., -1]
        return xy[..., :-1], xy[..., 1:]

    xy2 = xy.reshape(n_rows, d)

    if mode == "last":
        kernel = _split_last_x_kernel
        out_cols = (d - 1,)                   # y handled outside the kernel
    else:
        kernel = _split_shift_kernel
        out_cols = (d - 1, d - 1)

    gen = _tpu_generation()
    budget, vmem_limit = _GEN_VMEM.get(gen, _DEFAULT_VMEM)
    tm = _pick_row_tile(n_rows, d, out_cols, itemsize, budget)
    grid = (pl.cdiv(n_rows, tm),)
    bytes_accessed = int(itemsize * n_rows * (d + sum(out_cols)))

    def run(dim_semantics):
        return pl.pallas_call(
            kernel,
            out_shape=tuple(
                jax.ShapeDtypeStruct((n_rows, c), xy.dtype) for c in out_cols
            ),
            grid=grid,
            in_specs=[pl.BlockSpec((tm, d), lambda i: (i, 0))],
            out_specs=tuple(
                pl.BlockSpec((tm, c), lambda i: (i, 0)) for c in out_cols
            ),
            compiler_params=pltpu.CompilerParams(
                dimension_semantics=dim_semantics,
                vmem_limit_bytes=vmem_limit,
            ),
            cost_estimate=pl.CostEstimate(
                flops=0, transcendentals=0, bytes_accessed=bytes_accessed
            ),
        )(xy2)

    outs = None
    if gen == "v7" and hasattr(pltpu, "CORE_PARALLEL"):
        # Shard row tiles across the two v7x TensorCores; fall back safely.
        try:
            outs = run((pltpu.CORE_PARALLEL,))
        except Exception:
            outs = None
    if outs is None:
        outs = run(("parallel",))

    x = outs[0].reshape(lead + (d - 1,))
    if mode == "last":
        y = xy[..., -1]                       # lane-dense strided slice (tiny)
    else:
        y = outs[1].reshape(lead + (d - 1,))
    return x, y


# --------------------------------------------------------------------------
# Self-test
# --------------------------------------------------------------------------
if __name__ == "__main__":
    key = jax.random.PRNGKey(0)
    k_small, k_bf16, k_big = jax.random.split(key, 3)

    # Small shape implied by the module: [batch=2, seq=8, hidden=32].
    xy_small = jax.random.normal(k_small, (2, 8, 32), dtype=jnp.float32)
    # bf16 case exercises dtype-aware sublane alignment.
    xy_bf16 = jax.random.normal(k_bf16, (2, 8, 64)).astype(jnp.bfloat16)
    # Moderately sized case (1 MiB, d=512) triggers auto-dispatch Pallas path.
    xy_big = jax.random.normal(k_big, (64, 8, 512), dtype=jnp.float32)

    # --- Pallas path, forced, small f32 shape -----------------------------
    x_last, y_last = split_example(xy_small, mode="last", use_pallas=True)
    x_sh, y_sh = split_example(xy_small, mode="shift", use_pallas=True)
    jax.block_until_ready((x_last, y_last, x_sh, y_sh))
    assert x_last.shape == (2, 8, 31) and y_last.shape == (2, 8)
    assert x_sh.shape == (2, 8, 31) and y_sh.shape == (2, 8, 31)
    assert jnp.array_equal(x_last, xy_small[..., :-1])
    assert jnp.array_equal(y_last, xy_small[..., -1])
    assert jnp.array_equal(x_sh, xy_small[..., :-1])
    assert jnp.array_equal(y_sh, xy_small[..., 1:])

    # --- Pallas path, forced, small bf16 shape ----------------------------
    xb_l, yb_l = split_example(xy_bf16, mode="last", use_pallas=True)
    xb_s, yb_s = split_example(xy_bf16, mode="shift", use_pallas=True)
    jax.block_until_ready((xb_l, yb_l, xb_s, yb_s))
    assert jnp.array_equal(xb_l, xy_bf16[..., :-1])
    assert jnp.array_equal(yb_l, xy_bf16[..., -1])
    assert jnp.array_equal(xb_s, xy_bf16[..., :-1])
    assert jnp.array_equal(yb_s, xy_bf16[..., 1:])

    # --- Auto dispatch: tiny tensor -> fused jnp slices --------------------
    xa, ya = split_example(xy_small, mode="last")
    jax.block_until_ready((xa, ya))
    assert jnp.array_equal(xa, xy_small[..., :-1])
    assert jnp.array_equal(ya, xy_small[..., -1])

    # --- Auto dispatch: 1 MiB / d=512 -> tiled Pallas kernel ----------------
    xw_l, yw_l = split_example(xy_big, mode="last")
    xw_s, yw_s = split_example(xy_big, mode="shift")
    jax.block_until_ready((xw_l, yw_l, xw_s, yw_s))
    assert xw_l.shape == (64, 8, 511) and yw_l.shape == (64, 8)
    assert jnp.array_equal(xw_l, xy_big[..., :-1])
    assert jnp.array_equal(yw_l, xy_big[..., -1])
    assert jnp.array_equal(xw_s, xy_big[..., :-1])
    assert jnp.array_equal(yw_s, xy_big[..., 1:])

    print("KERNEL_OK")
</pallas_src>

<mosaic_0001>
module attributes {stable_mosaic.version = 11 : i64} {
  func.func @_split_last_x_kernel(%arg0: i32, %arg1: memref<16x32xf32, #tpu.memory_space<vmem>>, %arg2: memref<16x31xf32, #tpu.memory_space<vmem>>) attributes {dimension_semantics = [#tpu.dimension_semantics<parallel>], iteration_bounds = array<i64: 1>, scalar_prefetch = 0 : i64, scratch_operands = 0 : i64, tpu.core_type = #tpu.core_type<tc>, window_params = [{transform_indices = @transform_0, window_bounds = array<i64: 16, 32>}, {transform_indices = @transform_1, window_bounds = array<i64: 16, 31>}]} {
    %c0 = arith.constant 0 : index
    %c0_0 = arith.constant 0 : index
    %0 = vector.load %arg1[%c0, %c0_0] : memref<16x32xf32, #tpu.memory_space<vmem>>, vector<16x31xf32>
    %c0_1 = arith.constant 0 : index
    %c0_2 = arith.constant 0 : index
    %1 = vector.load %arg2[%c0_1, %c0_2] : memref<16x31xf32, #tpu.memory_space<vmem>>, vector<16x31xf32>
    tpu.vector_store %arg2[%c0_1, %c0_2], %0 {strides = array<i32>} : memref<16x31xf32, #tpu.memory_space<vmem>>, vector<16x31xf32>,
    return
  }
  func.func @transform_0(%arg0: i32) -> (i32, i32) {
    %c0_i32 = arith.constant 0 : i32
    %c0_i32_0 = arith.constant 0 : i32
    return %arg0, %c0_i32 : i32, i32
  }
  func.func @transform_1(%arg0: i32) -> (i32, i32) {
    %c0_i32 = arith.constant 0 : i32
    %c0_i32_0 = arith.constant 0 : i32
    return %arg0, %c0_i32 : i32, i32
  }
}

</mosaic_0001>

<llo_original>
// kernel: tpu_custom_call.1
$region0: #{tpu_custom_call.1}
  #allocation0 [shape = 'u32[]', space=smem, size = 0x4, offset = 0x4, fixed_abs, tag = 'smem constant byte address 0x4 - core index']
  #allocation1 [shape = 'u32[144,128]{1,0:T(1,128)}', space=vmem, size = 0x12000, scoped, tag = 'internal scratch']
  %s0 = inlined_call_operand.hbm [shape: f32[16,32], index: 0, kind: input, shape index: {}]
  %s1 = inlined_call_operand.hbm [shape: f32[16,31], index: 1, kind: output, shape index: {}]
  %s2 = sld [smem:[#allocation0]]
  $region18: #{tpu_custom_call.1} parent=0
    _
  %s4 = ssub.s32 1, %s2
  %s5 = scalar_select 0, %s4, %s2
  $region1: #{tpu_custom_call.1} parent=0
    #allocation2 [shape = 'u8[8192]{0}', space=vmem, size = 0x2000, scoped, tag = 'input window, operand 0, single buffered']
    #allocation3 [shape = 's32[1]{0}', space=sflag, size = 0x4, scoped, tag = 'scoped memory for tpu_custom_call.1']
    #allocation4 [shape = 's32[1]{0}', space=sflag, size = 0x4, scoped, tag = 'scoped memory for tpu_custom_call.1']
    #allocation5 [shape = 'u8[8192]{0}', space=vmem, size = 0x2000, scoped, tag = 'output window, operand 0, single buffered']
    %6 = vsyncpa [#allocation3], 0
    %7 = vsyncpa [#allocation4], 0
    // Predicated region
    $region2: #{tpu_custom_call.1} parent=1 // pred_check
      _
    $region3: #{tpu_custom_call.1} parent=1 // pred_check_branch
      %9 = sbr.rel (0) target = $region5
    $region4: #{tpu_custom_call.1} parent=1 // pred_region
      %s11 = ssub.s32 256, 256
      %12 = vsyncadd [#allocation3], %s11
      %s13 = sshll.u32 [#allocation2], 4
      %s14 = int_to_ptr.vmem [resolvable:$true] %s13
      %19 = dma.hbm_to_vmem [thread:$0]  %s0, 256, %s14, [#allocation3], 128, 128, 8
    $region5: #{tpu_custom_call.1} parent=1 // pred_fallthru
      _
    // Predicated region
    $region6: #{tpu_custom_call.1} parent=1 // pred_check
      _
    $region7: #{tpu_custom_call.1} parent=1 // pred_check_branch
      %21 = sbr.rel (0) target = $region9
    $region8: #{tpu_custom_call.1} parent=1 // pred_region
      %22 = dma.done [#allocation3], 256
    $region9: #{tpu_custom_call.1} parent=1 // pred_fallthru
      _
    %v23 = vld [vmem:[#allocation2] sm:$0xff]
    %v24 = vld [vmem:[#allocation2 + $0x8] sm:$0xff]
    %vm25 = vcmask 252928
    %26 = vst.msk [vmem:[#allocation5] sm:$0xff] %vm25, %v23
    %27 = vst.msk [vmem:[#allocation5 + $0x8] sm:$0xff] %vm25, %v24
    // Predicated region
    $region10: #{tpu_custom_call.1} parent=1 // pred_check
      _
    $region11: #{tpu_custom_call.1} parent=1 // pred_check_branch
      %29 = sbr.rel (0) target = $region13
    $region12: #{tpu_custom_call.1} parent=1 // pred_region
      %s31 = ssub.s32 256, 256
      %32 = vsyncadd [#allocation4], %s31
      %s33 = sshll.u32 [#allocation5], 4
      %s34 = int_to_ptr.vmem [resolvable:$true] %s33
      %39 = dma.vmem_to_hbm [thread:$0]  %s34, 256, %s1, [#allocation4], 128, 128, 8
    $region13: #{tpu_custom_call.1} parent=1 // pred_fallthru
      _
    // Predicated region
    $region14: #{tpu_custom_call.1} parent=1 // pred_check
      _
    $region15: #{tpu_custom_call.1} parent=1 // pred_check_branch
      %41 = sbr.rel (0) target = $region17
    $region16: #{tpu_custom_call.1} parent=1 // pred_region
      %42 = dma.done [#allocation4], 256
    $region17: #{tpu_custom_call.1} parent=1 // pred_fallthru
      _
    %43 = vsyncpa [#allocation3], 1
    %44 = vsyncpa [#allocation4], 1

</llo_original>
